<compile_context>
chip_gen: v7x
topology: tpu7x:2x2x1
jax: 0.10.0
libtpu: 0.0.40
codegen_flags: <defaults>
</compile_context>

<pallas_src>
import functools

import jax
import jax.numpy as jnp
from jax.experimental import pallas as pl
from jax.experimental.pallas import tpu as pltpu


def _ce_kernel(pred_ref, label_ref, *rest, n_rows, n_classes,
               blocks_per_split, tm, has_sw, has_cw):
    """Softmax cross-entropy over one row tile; per-split (tm, 1) partial sums."""
    idx = 0
    sw_ref = cw_ref = None
    if has_sw:
        sw_ref = rest[idx]; idx += 1
    if has_cw:
        cw_ref = rest[idx]; idx += 1
    out_ref = rest[idx]

    p = pl.program_id(0)          # split index ("parallel" -> megacore on v7x)
    b = pl.program_id(1)          # block index within split ("arbitrary")

    @pl.when(b == 0)
    def _():
        out_ref[...] = jnp.zeros_like(out_ref)

    x = pred_ref[...].astype(jnp.float32)             # (tm, C) cast in VMEM
    labels = label_ref[...]                           # (tm, 1) int32

    # numerically stable log-sum-exp along the class (lane) axis
    m = jnp.max(x, axis=-1, keepdims=True)            # (tm, 1)
    lse = m + jnp.log(jnp.sum(jnp.exp(x - m), axis=-1, keepdims=True))

    # one-hot gather of the labelled logit: ONE full-width select feeding an XLU
    # reduce; everything afterwards is narrow (tm, 1) work.
    cols = jax.lax.broadcasted_iota(jnp.int32, x.shape, 1)       # (tm, C)
    onehot = cols == labels                                      # (tm, C) bool
    x_label = jnp.sum(jnp.where(onehot, x, 0.0),
                      axis=-1, keepdims=True)                    # (tm, 1)

    per_sample = lse - x_label                                   # (tm, 1)
    if has_cw:
        # gather class_weight[label] via a second one-hot reduce (XLU has slack)
        cw_label = jnp.sum(jnp.where(onehot, cw_ref[...], 0.0),
                           axis=-1, keepdims=True)               # (tm, 1)
        per_sample = per_sample * cw_label
    if has_sw:
        per_sample = per_sample * sw_ref[...].astype(jnp.float32)

    # combined validity mask (select, not multiply, so garbage/NaN can't leak):
    #   * labels outside [0, C) contribute 0 (ignore_index behaviour),
    #   * rows past the true batch end (edge block, or the duplicated clamped
    #     phantom block of an odd split) contribute 0.
    row0 = (p * blocks_per_split + b) * tm
    rows = row0 + jax.lax.broadcasted_iota(jnp.int32, (tm, 1), 0)
    valid = (labels >= 0) & (labels < n_classes) & (rows < n_rows)
    out_ref[...] += jnp.where(valid, per_sample, 0.0)


def cross_entropy_loss(cls_score, label, weight=None, class_weight=None,
                       loss_weight=1.0, avg_factor=None, reduction='mean',
                       tm=None):
    """Pallas implementation of mmdet CrossEntropyLoss.forward (softmax path).

    cls_score:    (N, C) logits (any float dtype; read natively, cast in-kernel)
    label:        (N,)   int class indices (out-of-range labels contribute 0)
    weight:       optional (N,) per-sample weights
    class_weight: optional (C,) per-class weights
    Returns a scalar float32 loss.
    """
    if reduction not in ('mean', 'sum'):
        # TODO(synk): reduction='none' (per-sample output) not implemented.
        raise NotImplementedError("reduction must be 'mean' or 'sum'")

    n, c = cls_score.shape
    itemsize = cls_score.dtype.itemsize

    # ---- row tile selection: bytes-per-tile target, sublane-packing aligned ----
    # Align rows to the dtype's sublane packing (8 f32 / 16 bf16 / 32 int8-fp8).
    row_align = 8 * max(1, 4 // itemsize)
    if tm is None:
        # ~4 MiB of f32 working set per tile: big enough to amortize the ~0.35 us
        # per-grid-step overhead (>=85% of HBM roofline at MiB-scale tiles), small
        # enough that 2x native tile + ~3x f32 temporaries fit v7x's 64 MiB VMEM.
        target_f32_bytes = 4 << 20
        tm = max(row_align, target_f32_bytes // max(1, c * 4))
    n_al = ((n + row_align - 1) // row_align) * row_align
    tm = min(int(tm), n_al)
    tm = max(row_align, (tm // row_align) * row_align)

    total_blocks = -(-n // tm)
    # Always split 2 ways when there is more than one block so v7x's second
    # TensorCore gets half the rows (harmless 2-iteration outer loop on single-TC
    # v5e/v6e). Odd block counts: clamp the phantom trailing block's index to the
    # last real block; its rows are masked in-kernel, so it contributes 0.
    num_splits = 2 if total_blocks >= 2 else 1
    blocks_per_split = -(-total_blocks // num_splits)
    last_block = total_blocks - 1

    def row_map(p, b):
        return (jnp.minimum(p * blocks_per_split + b, last_block), 0)

    # ---- inputs (no padding / upcast copies of the logits in HBM) ----
    has_sw = weight is not None
    has_cw = class_weight is not None

    label2 = label.astype(jnp.int32).reshape(n, 1)
    inputs = [cls_score, label2]
    in_specs = [
        pl.BlockSpec((tm, c), row_map),     # logits tile (native dtype)
        pl.BlockSpec((tm, 1), row_map),     # labels tile
    ]
    if has_sw:
        inputs.append(weight.astype(jnp.float32).reshape(n, 1))
        in_specs.append(pl.BlockSpec((tm, 1), row_map))
    if has_cw:
        inputs.append(jnp.asarray(class_weight, jnp.float32).reshape(1, c))
        in_specs.append(pl.BlockSpec((1, c), lambda p, b: (0, 0)))  # resident
    # TODO(synk): on v5e, consider pipeline_mode=pl.Buffered(3) on the logits spec
    # if xprof shows exposed DMA at step boundaries (costs one extra tile of VMEM).

    # ---- VMEM accounting: double-buffered streams + in-kernel f32 temporaries ----
    f32_tile = tm * c * 4
    vmem_need = (2 * tm * c * itemsize            # logits double buffer (native dtype)
                 + 3 * f32_tile                   # f32 copy of x + exp/one-hot temps
                 + 2 * tm * 4 * (1 + int(has_sw)) # labels (+ sample weights) streams
                 + 8 * tm * 4                     # (tm,1) narrow temps + accumulator
                 + (2 * c * 4 if has_cw else 0))  # resident class weights
    vmem_limit = int(min(max(vmem_need + (4 << 20), 16 << 20), 48 << 20))

    cost = pl.CostEstimate(
        flops=int(8 * n * c),
        transcendentals=int(n * c + 2 * n),
        bytes_accessed=int(n * c * itemsize + n * 4 * (1 + int(has_sw))
                           + num_splits * tm * 4 + (c * 4 if has_cw else 0)),
    )

    kernel = functools.partial(
        _ce_kernel, n_rows=n, n_classes=c, blocks_per_split=blocks_per_split,
        tm=tm, has_sw=has_sw, has_cw=has_cw)

    partials = pl.pallas_call(
        kernel,
        out_shape=jax.ShapeDtypeStruct((num_splits * tm, 1), jnp.float32),
        grid_spec=pltpu.PrefetchScalarGridSpec(
            num_scalar_prefetch=0,
            grid=(num_splits, blocks_per_split),
            in_specs=in_specs,
            # same block for all b -> output-resident (tm, 1) accumulator per split
            out_specs=pl.BlockSpec((tm, 1), lambda p, b: (p, 0)),
        ),
        compiler_params=pltpu.CompilerParams(
            dimension_semantics=("parallel", "arbitrary"),
            vmem_limit_bytes=vmem_limit),
        cost_estimate=cost,
    )(*inputs)

    total = jnp.sum(partials)
    if reduction == 'sum':
        return (loss_weight * total).astype(jnp.float32)
    denom = jnp.float32(n) if avg_factor is None else jnp.float32(avg_factor)
    return (loss_weight * total / denom).astype(jnp.float32)


# TODO(synk): use_sigmoid / use_mask branches (binary_cross_entropy,
# mask_cross_entropy) and reduction='none' are not implemented; the default
# CrossEntropyLoss() uses the softmax cross_entropy path implemented above.
# TODO(synk): optional bf16 exp path (keep (x - m)/exp in bf16, accumulate the
# exp-sum in f32) could help the VALU/EUP-bound regime on v6e/v7x with bf16
# logits, at a small precision cost; kept f32 for exact parity with the reference.


if __name__ == "__main__":
    key = jax.random.PRNGKey(0)
    k1, k2, k3, k4, k5 = jax.random.split(key, 5)

    # Case 1: default CrossEntropyLoss() — per-sample weights, no class weights.
    N, C = 16, 32
    cls_score = jax.random.normal(k1, (N, C), jnp.float32)
    label = jax.random.randint(k2, (N,), 0, C, jnp.int32)
    weight = jax.random.uniform(k3, (N,), jnp.float32)

    loss = jax.block_until_ready(
        cross_entropy_loss(cls_score, label, weight=weight, loss_weight=1.0))
    logp = jax.nn.log_softmax(cls_score, axis=-1)
    per = -jnp.take_along_axis(logp, label[:, None], axis=-1)[:, 0]
    ref = jnp.mean(per * weight)
    assert jnp.allclose(loss, ref, rtol=1e-5, atol=1e-5), (loss, ref)

    # Case 2: ragged batch (N not a multiple of 8) + class weights, no sample weights.
    N2 = 13
    cls2 = jax.random.normal(k4, (N2, C), jnp.float32)
    lab2 = jax.random.randint(k2, (N2,), 0, C, jnp.int32)
    cw = jnp.linspace(0.5, 1.5, C, dtype=jnp.float32)
    loss2 = jax.block_until_ready(
        cross_entropy_loss(cls2, lab2, class_weight=cw, loss_weight=2.0))
    logp2 = jax.nn.log_softmax(cls2, axis=-1)
    per2 = -jnp.take_along_axis(logp2, lab2[:, None], axis=-1)[:, 0] * cw[lab2]
    ref2 = 2.0 * jnp.mean(per2)
    assert jnp.allclose(loss2, ref2, rtol=1e-5, atol=1e-5), (loss2, ref2)

    # Case 3: multi-block with an ODD block count (exercises the clamped 2-way
    # split) + ignore_index-style labels (-100) that contribute 0 but count in 1/N.
    N3 = 40
    cls3 = jax.random.normal(k5, (N3, C), jnp.float32)
    lab3 = jax.random.randint(k3, (N3,), 0, C, jnp.int32)
    lab3 = lab3.at[::7].set(-100)
    loss3 = jax.block_until_ready(cross_entropy_loss(cls3, lab3, tm=8))
    valid3 = (lab3 >= 0) & (lab3 < C)
    logp3 = jax.nn.log_softmax(cls3, axis=-1)
    per3 = -jnp.take_along_axis(logp3, jnp.where(valid3, lab3, 0)[:, None],
                                axis=-1)[:, 0]
    per3 = jnp.where(valid3, per3, 0.0)
    ref3 = jnp.sum(per3) / N3
    assert jnp.allclose(loss3, ref3, rtol=1e-5, atol=1e-5), (loss3, ref3)

    print("KERNEL_OK")
</pallas_src>

<mosaic_0001>
module attributes {stable_mosaic.version = 11 : i64} {
  func.func @_ce_kernel(%arg0: i32, %arg1: i32, %arg2: memref<16x32xf32, #tpu.memory_space<vmem>>, %arg3: memref<16x1xi32, #tpu.memory_space<vmem>>, %arg4: memref<16x1xf32, #tpu.memory_space<vmem>>, %arg5: memref<16x1xf32, #tpu.memory_space<vmem>>) attributes {dimension_semantics = [#tpu.dimension_semantics<parallel>, #tpu.dimension_semantics<arbitrary>], iteration_bounds = array<i64: 1, 1>, scalar_prefetch = 0 : i64, scratch_operands = 0 : i64, tpu.core_type = #tpu.core_type<tc>, window_params = [{transform_indices = @transform_0, window_bounds = array<i64: 16, 32>}, {transform_indices = @transform_1, window_bounds = array<i64: 16, 1>}, {transform_indices = @transform_2, window_bounds = array<i64: 16, 1>}, {transform_indices = @transform_3, window_bounds = array<i64: 16, 1>}]} {
    %c0_i32 = arith.constant 0 : i32
    %0 = arith.cmpi eq, %arg1, %c0_i32 : i32
    %1 = arith.extui %0 : i1 to i32
    %c0_i32_0 = arith.constant 0 : i32
    %2 = arith.cmpi ne, %1, %c0_i32_0 : i32
    scf.if %2 {
      %cst_16 = arith.constant 0.000000e+00 : f32
      %43 = vector.broadcast %cst_16 : f32 to vector<16x1xf32>
      %c0_17 = arith.constant 0 : index
      %c0_18 = arith.constant 0 : index
      %44 = vector.load %arg5[%c0_17, %c0_18] : memref<16x1xf32, #tpu.memory_space<vmem>>, vector<16x1xf32>
      tpu.vector_store %arg5[%c0_17, %c0_18], %43 {strides = array<i32>} : memref<16x1xf32, #tpu.memory_space<vmem>>, vector<16x1xf32>,
    } else {
    }
    %c0 = arith.constant 0 : index
    %c0_1 = arith.constant 0 : index
    %3 = vector.load %arg2[%c0, %c0_1] : memref<16x32xf32, #tpu.memory_space<vmem>>, vector<16x32xf32>
    %c0_2 = arith.constant 0 : index
    %c0_3 = arith.constant 0 : index
    %4 = vector.load %arg3[%c0_2, %c0_3] : memref<16x1xi32, #tpu.memory_space<vmem>>, vector<16x1xi32>
    %cst = arith.constant dense<0xFF800000> : vector<16xf32>
    %5 = vector.multi_reduction <maximumf>, %3, %cst [1] : vector<16x32xf32> to vector<16xf32>
    %6 = vector.shape_cast %5 : vector<16xf32> to vector<16x1xf32>
    %7 = vector.broadcast %6 : vector<16x1xf32> to vector<16x32xf32>
    %8 = arith.subf %3, %7 : vector<16x32xf32>
    %9 = math.exp %8 : vector<16x32xf32>
    %cst_4 = arith.constant dense<0.000000e+00> : vector<16xf32>
    %10 = vector.multi_reduction <add>, %9, %cst_4 [1] : vector<16x32xf32> to vector<16xf32>
    %11 = vector.shape_cast %10 : vector<16xf32> to vector<16x1xf32>
    %12 = math.log %11 : vector<16x1xf32>
    %13 = arith.addf %6, %12 : vector<16x1xf32>
    %14 = tpu.iota {dimensions = array<i32: 1>} : vector<16x32xi32>
    %15 = vector.broadcast %4 : vector<16x1xi32> to vector<16x32xi32>
    %16 = arith.cmpi eq, %14, %15 : vector<16x32xi32>
    %cst_5 = arith.constant 0.000000e+00 : f32
    %17 = vector.broadcast %cst_5 : f32 to vector<16x32xf32>
    %18 = arith.select %16, %3, %17 : vector<16x32xi1>, vector<16x32xf32>
    %cst_6 = arith.constant dense<0.000000e+00> : vector<16xf32>
    %19 = vector.multi_reduction <add>, %18, %cst_6 [1] : vector<16x32xf32> to vector<16xf32>
    %20 = vector.shape_cast %19 : vector<16xf32> to vector<16x1xf32>
    %21 = arith.subf %13, %20 : vector<16x1xf32>
    %c0_7 = arith.constant 0 : index
    %c0_8 = arith.constant 0 : index
    %22 = vector.load %arg4[%c0_7, %c0_8] : memref<16x1xf32, #tpu.memory_space<vmem>>, vector<16x1xf32>
    %23 = arith.mulf %21, %22 : vector<16x1xf32>
    %c1_i32 = arith.constant 1 : i32
    %24 = arith.muli %arg0, %c1_i32 : i32
    %25 = arith.addi %24, %arg1 : i32
    %c16_i32 = arith.constant 16 : i32
    %26 = arith.muli %25, %c16_i32 : i32
    %27 = tpu.iota {dimensions = array<i32: 0>} : vector<16x1xi32>
    %28 = vector.broadcast %26 : i32 to vector<16x1xi32>
    %29 = arith.addi %28, %27 : vector<16x1xi32>
    %c0_i32_9 = arith.constant 0 : i32
    %30 = vector.broadcast %c0_i32_9 : i32 to vector<16x1xi32>
    %31 = arith.cmpi sge, %4, %30 : vector<16x1xi32>
    %c32_i32 = arith.constant 32 : i32
    %32 = vector.broadcast %c32_i32 : i32 to vector<16x1xi32>
    %33 = arith.cmpi slt, %4, %32 : vector<16x1xi32>
    %34 = arith.andi %31, %33 : vector<16x1xi1>
    %c16_i32_10 = arith.constant 16 : i32
    %35 = vector.broadcast %c16_i32_10 : i32 to vector<16x1xi32>
    %36 = arith.cmpi slt, %29, %35 : vector<16x1xi32>
    %37 = arith.andi %34, %36 : vector<16x1xi1>
    %c0_11 = arith.constant 0 : index
    %c0_12 = arith.constant 0 : index
    %38 = vector.load %arg5[%c0_11, %c0_12] : memref<16x1xf32, #tpu.memory_space<vmem>>, vector<16x1xf32>
    %cst_13 = arith.constant 0.000000e+00 : f32
    %39 = vector.broadcast %cst_13 : f32 to vector<16x1xf32>
    %40 = arith.select %37, %23, %39 : vector<16x1xi1>, vector<16x1xf32>
    %41 = arith.addf %38, %40 : vector<16x1xf32>
    %c0_14 = arith.constant 0 : index
    %c0_15 = arith.constant 0 : index
    %42 = vector.load %arg5[%c0_14, %c0_15] : memref<16x1xf32, #tpu.memory_space<vmem>>, vector<16x1xf32>
    tpu.vector_store %arg5[%c0_14, %c0_15], %41 {strides = array<i32>} : memref<16x1xf32, #tpu.memory_space<vmem>>, vector<16x1xf32>,
    return
  }
  func.func @transform_0(%arg0: i32, %arg1: i32) -> (i32, i32) {
    %c1_i32 = arith.constant 1 : i32
    %0 = arith.muli %arg0, %c1_i32 : i32
    %1 = arith.addi %0, %arg1 : i32
    %c0_i32 = arith.constant 0 : i32
    %2 = arith.minsi %1, %c0_i32 : i32
    %c0_i32_0 = arith.constant 0 : i32
    %c0_i32_1 = arith.constant 0 : i32
    return %2, %c0_i32_0 : i32, i32
  }
  func.func @transform_1(%arg0: i32, %arg1: i32) -> (i32, i32) {
    %c1_i32 = arith.constant 1 : i32
    %0 = arith.muli %arg0, %c1_i32 : i32
    %1 = arith.addi %0, %arg1 : i32
    %c0_i32 = arith.constant 0 : i32
    %2 = arith.minsi %1, %c0_i32 : i32
    %c0_i32_0 = arith.constant 0 : i32
    %c0_i32_1 = arith.constant 0 : i32
    return %2, %c0_i32_0 : i32, i32
  }
  func.func @transform_2(%arg0: i32, %arg1: i32) -> (i32, i32) {
    %c1_i32 = arith.constant 1 : i32
    %0 = arith.muli %arg0, %c1_i32 : i32
    %1 = arith.addi %0, %arg1 : i32
    %c0_i32 = arith.constant 0 : i32
    %2 = arith.minsi %1, %c0_i32 : i32
    %c0_i32_0 = arith.constant 0 : i32
    %c0_i32_1 = arith.constant 0 : i32
    return %2, %c0_i32_0 : i32, i32
  }
  func.func @transform_3(%arg0: i32, %arg1: i32) -> (i32, i32) {
    %c0_i32 = arith.constant 0 : i32
    %c0_i32_0 = arith.constant 0 : i32
    return %arg0, %c0_i32 : i32, i32
  }
}

</mosaic_0001>

<llo_original>
// kernel: tpu_custom_call.1
$region0: #{tpu_custom_call.1}
  #allocation0 [shape = 'u32[]', space=smem, size = 0x4, offset = 0x4, fixed_abs, tag = 'smem constant byte address 0x4 - core index']
  #allocation1 [shape = 'u32[144,128]{1,0:T(1,128)}', space=vmem, size = 0x12000, scoped, tag = 'internal scratch']
  %s0 = inlined_call_operand.vmem [shape: f32[16,32], index: 0, kind: input, shape index: {}]
  %s1 = inlined_call_operand.vmem [shape: s32[16,1], index: 1, kind: input, shape index: {}]
  %s2 = inlined_call_operand.vmem [shape: f32[16,1], index: 2, kind: input, shape index: {}]
  %s3 = inlined_call_operand.vmem [shape: f32[16,1], index: 3, kind: output, shape index: {}]
  %s4 = sld [smem:[#allocation0]]
  $region26: #{tpu_custom_call.1} parent=0
    _
  %s6 = ssub.s32 1, %s4
  %s7 = scalar_select 0, %s6, %s4
  // Predicated region
  $region2: #{tpu_custom_call.1} parent=0 // pred_check
    _
  $region3: #{tpu_custom_call.1} parent=0 // pred_check_branch
    %9 = sbr.rel (0) target = $region5
  $region4: #{tpu_custom_call.1} parent=0 // pred_region
    %s10 = sadd.s32 0, 0
    %p11 = scmp.lt.s32.totalorder %s10, 0
    %s12 = scalar_select %p11, %s10, 0
    %s13 = smul.u32 2, %s12
    %p14 = scmp.lt.s32.totalorder %s13, 1
    %s15 = scalar_select %p14, %s13, 1
    %s16 = smul.addr %s15, 8
    %s17 = scalar_lea.vmem %s0, %s16
    %s18 = sadd.s32 0, 0
    %p19 = scmp.lt.s32.totalorder %s18, 0
    %s20 = scalar_select %p19, %s18, 0
    %s21 = smul.u32 2, %s20
  $region5: #{tpu_custom_call.1} parent=0 // pred_fallthru
    _
  // Predicated region
  $region6: #{tpu_custom_call.1} parent=0 // pred_check
    _
  $region7: #{tpu_custom_call.1} parent=0 // pred_check_branch
    %23 = sbr.rel (0) target = $region9
  $region8: #{tpu_custom_call.1} parent=0 // pred_region
    %s24 = sadd.s32 0, 0
    %p25 = scmp.lt.s32.totalorder %s24, 0
    %s26 = scalar_select %p25, %s24, 0
    %s27 = smul.u32 2, %s26
    %p28 = scmp.lt.s32.totalorder %s27, 1
    %s29 = scalar_select %p28, %s27, 1
    %s30 = smul.addr %s29, 8
    %s31 = scalar_lea.vmem %s1, %s30
    %s32 = sadd.s32 0, 0
    %p33 = scmp.lt.s32.totalorder %s32, 0
    %s34 = scalar_select %p33, %s32, 0
    %s35 = smul.u32 2, %s34
  $region9: #{tpu_custom_call.1} parent=0 // pred_fallthru
    _
  // Predicated region
  $region10: #{tpu_custom_call.1} parent=0 // pred_check
    _
  $region11: #{tpu_custom_call.1} parent=0 // pred_check_branch
    %37 = sbr.rel (0) target = $region13
  $region12: #{tpu_custom_call.1} parent=0 // pred_region
    %s38 = sadd.s32 0, 0
    %p39 = scmp.lt.s32.totalorder %s38, 0
    %s40 = scalar_select %p39, %s38, 0
    %s41 = smul.u32 2, %s40
    %p42 = scmp.lt.s32.totalorder %s41, 1
    %s43 = scalar_select %p42, %s41, 1
    %s44 = smul.addr %s43, 8
    %s45 = scalar_lea.vmem %s2, %s44
    %s46 = sadd.s32 0, 0
    %p47 = scmp.lt.s32.totalorder %s46, 0
    %s48 = scalar_select %p47, %s46, 0
    %s49 = smul.u32 2, %s48
  $region13: #{tpu_custom_call.1} parent=0 // pred_fallthru
    _
  %s50 = sadd.s32 0, 0
  %p51 = scmp.lt.s32.totalorder %s50, 0
  %s52 = scalar_select %p51, %s50, 0
  %s53 = smul.u32 2, %s52
  %p54 = scmp.lt.s32.totalorder %s53, 1
  %s55 = scalar_select %p54, %s53, 1
  %s56 = smul.addr %s55, 8
  %s57 = scalar_lea.vmem %s0, %s56
  %s58 = sadd.s32 0, 0
  %p59 = scmp.lt.s32.totalorder %s58, 0
  %s60 = scalar_select %p59, %s58, 0
  %s61 = smul.u32 2, %s60
  %p62 = scmp.lt.s32.totalorder %s61, 1
  %s63 = scalar_select %p62, %s61, 1
  %s64 = smul.addr %s63, 8
  %s65 = scalar_lea.vmem %s1, %s64
  %s66 = sadd.s32 0, 0
  %p67 = scmp.lt.s32.totalorder %s66, 0
  %s68 = scalar_select %p67, %s66, 0
  %s69 = smul.u32 2, %s68
  %p70 = scmp.lt.s32.totalorder %s69, 1
  %s71 = scalar_select %p70, %s69, 1
  %s72 = smul.addr %s71, 8
  %s73 = scalar_lea.vmem %s2, %s72
  %s74 = sadd.s32 0, 0
  %p75 = scmp.lt.s32.totalorder %s74, 0
  %s76 = scalar_select %p75, %s74, 0
  %s77 = smul.u32 2, %s76
  %p78 = scmp.lt.s32.totalorder %s77, 1
  %s79 = scalar_select %p78, %s77, 1
  %s80 = smul.addr %s79, 8
  %s81 = scalar_lea.vmem %s0, %s80
  %s82 = sadd.s32 0, 0
  %p83 = scmp.lt.s32.totalorder %s82, 0
  %s84 = scalar_select %p83, %s82, 0
  %s85 = smul.u32 2, %s84
  %s86 = sadd.s32 0, 0
  %p87 = scmp.lt.s32.totalorder %s86, 0
  %s88 = scalar_select %p87, %s86, 0
  %s89 = smul.u32 2, %s88
  %p90 = scmp.lt.s32.totalorder %s89, 1
  %s91 = scalar_select %p90, %s89, 1
  %s92 = smul.addr %s91, 8
  %s93 = scalar_lea.vmem %s1, %s92
  %s94 = sadd.s32 0, 0
  %p95 = scmp.lt.s32.totalorder %s94, 0
  %s96 = scalar_select %p95, %s94, 0
  %s97 = smul.u32 2, %s96
  %s98 = sadd.s32 0, 0
  %p99 = scmp.lt.s32.totalorder %s98, 0
  %s100 = scalar_select %p99, %s98, 0
  %s101 = smul.u32 2, %s100
  %p102 = scmp.lt.s32.totalorder %s101, 1
  %s103 = scalar_select %p102, %s101, 1
  %s104 = smul.addr %s103, 8
  %s105 = scalar_lea.vmem %s2, %s104
  %s106 = sadd.s32 0, 0
  %p107 = scmp.lt.s32.totalorder %s106, 0
  %s108 = scalar_select %p107, %s106, 0
  %s109 = smul.u32 2, %s108
  %p110 = scmp.eq.s32.totalorder 0, 0
  // Predicated region
  $region14: #{tpu_custom_call.1} parent=0 // pred_check
    %p111 = pneg %p110
  $region15: #{tpu_custom_call.1} parent=0 // pred_check_branch
    %113 = sbr.rel (%p111) target = $region17
  $region16: #{tpu_custom_call.1} parent=0 // pred_region
    %vm114 = vcmask 7168
    %115 = vst.msk [vmem:[%s3] sm:$0xff] %vm114, 0.0
    %116 = vst.msk [vmem:[%s3 + $0x8] sm:$0xff] %vm114, 0.0
  $region17: #{tpu_custom_call.1} parent=0 // pred_fallthru
    _
  %v117 = vld [vmem:[%s81] sm:$0xff]
  %v118 = vld [vmem:[%s81 + $0x8] sm:$0xff]
  %v119 = vld [vmem:[%s93] sm:$0xff]
  %v120 = vld [vmem:[%s93 + $0x8] sm:$0xff]
  %vm121 = vcmask 261120
  %v122 = vsel %vm121, %v117, -inf
  %123 = vmax.xlane.f32.xlu0 %v122
  %v124 = vpop.xlane.xlu0 %123
  %v125 = vsel %vm121, %v118, -inf
  %126 = vmax.xlane.f32.xlu0 %v125
  %v127 = vpop.xlane.xlu0 %126
  %v128 = vsub.f32 %v117, %v124
  %v129 = vsub.f32 %v118, %v127
  %v130 = vmul.f32 %v128, 1.442695
  %v131 = vpow.pop %v130
  %v132 = vmul.f32 %v129, 1.442695
  %v133 = vpow.pop %v132
  %v134 = vsel %vm121, %v131, 0.0
  %135 = vadd.xlane.f32.xlu0 %v134
  %v136 = vpop.xlane.xlu0 %135
  %v137 = vsel %vm121, %v133, 0.0
  %138 = vadd.xlane.f32.xlu0 %v137
  %v139 = vpop.xlane.xlu0 %138
  %v140 = vlog2.pop %v136
  %v141 = vmul.f32 %v140, 0.6931472
  %v142 = vlog2.pop %v139
  %v143 = vmul.f32 %v142, 0.6931472
  %v144 = vadd.f32 %v124, %v141
  %v145 = vadd.f32 %v127, %v143
  %v146 = vlaneseq
  %v147 = vand.u32 %v146, 127
  %148 = vset.pattern.permute.xlu0 0
  %149 = vperm.xlu0 %148, %v119
  %v150 = vpop.permute.xlu0 %149
  %151 = vset.pattern.permute.xlu0 0
  %152 = vperm.xlu0 %151, %v120
  %v153 = vpop.permute.xlu0 %152
  %vm154 = vcmp.eq.s32.totalorder %v147, %v150
  %vm155 = vcmp.eq.s32.totalorder %v147, %v153
  %v156 = vsel %vm154, %v117, 0.0
  %v157 = vsel %vm155, %v118, 0.0
  %v158 = vsel %vm121, %v156, 0.0
  %159 = vadd.xlane.f32.xlu0 %v158
  %v160 = vpop.xlane.xlu0 %159
  %v161 = vsel %vm121, %v157, 0.0
  %162 = vadd.xlane.f32.xlu0 %v161
  %v163 = vpop.xlane.xlu0 %162
  %v164 = vsub.f32 %v144, %v160
  %v165 = vsub.f32 %v145, %v163
  %v166 = vld [vmem:[%s105] sm:$0xff]
  %v167 = vld [vmem:[%s105 + $0x8] sm:$0xff]
  %v168 = vmul.f32 %v164, %v166
  %v169 = vmul.f32 %v165, %v167
  %s170 = sadd.s32 0, 0
  %s171 = smul.u32 %s170, 16
  %v172 = vlaneseq
  %v173 = vshrl.u32 %v172, 7
  %v174 = vadd.s32 %v173, 8
  %v175 = vstv %s171
  %v176 = vadd.s32 %v175, %v173
  %v177 = vadd.s32 %v175, %v174
  %vm178 = vcmp.ge.s32.totalorder %v119, 0
  %vm179 = vcmp.ge.s32.totalorder %v120, 0
  %vm180 = vcmp.lt.s32.totalorder %v119, 32
  %vm181 = vcmp.lt.s32.totalorder %v120, 32
  %vm182 = vmand %vm178, %vm180
  %vm183 = vmand %vm179, %vm181
  %vm184 = vcmp.lt.s32.totalorder %v176, 16
  %vm185 = vcmp.lt.s32.totalorder %v177, 16
  %vm186 = vmand %vm182, %vm184
  %vm187 = vmand %vm183, %vm185
  %v188 = vld [vmem:[%s3] sm:$0xff]
  %v189 = vld [vmem:[%s3 + $0x8] sm:$0xff]
  %v190 = vsel %vm186, %v168, 0.0
  %v191 = vsel %vm187, %v169, 0.0
  %v192 = vadd.f32 %v188, %v190
  %v193 = vadd.f32 %v189, %v191
  %vm194 = vcmask 7168
  %195 = vst.msk [vmem:[%s3] sm:$0xff] %vm194, %v192
  %196 = vst.msk [vmem:[%s3 + $0x8] sm:$0xff] %vm194, %v193
  // Predicated region
  $region18: #{tpu_custom_call.1} parent=0 // pred_check
    _
  $region19: #{tpu_custom_call.1} parent=0 // pred_check_branch
    %198 = sbr.rel (0) target = $region21
  $region20: #{tpu_custom_call.1} parent=0 // pred_region
    _
  $region21: #{tpu_custom_call.1} parent=0 // pred_fallthru
    _
  // Predicated region
  $region22: #{tpu_custom_call.1} parent=0 // pred_check
    _
  $region23: #{tpu_custom_call.1} parent=0 // pred_check_branch
    %200 = sbr.rel (0) target = $region25
  $region24: #{tpu_custom_call.1} parent=0 // pred_region
    _
  $region25: #{tpu_custom_call.1} parent=0 // pred_fallthru
    _

</llo_original>
